<compile_context>
chip_gen: v6e
topology: v6e:2x2x1
jax: 0.10.0
libtpu: 0.0.40
codegen_flags: <defaults>
</compile_context>

<pallas_src>
import jax
import jax.numpy as jnp
from jax import lax
from jax.experimental import pallas as pl
from jax.experimental.pallas import tpu as pltpu

LN_EPS = 1e-5  # PyTorch nn.LayerNorm default


def _round_up(x, m):
    return ((x + m - 1) // m) * m


def _linear_ln_relu(h, w_ref, ln_ref):
    """Linear -> LayerNorm -> ReLU (Dropout is identity in eval mode).

    ln_ref rows: 0 = linear bias, 1 = LN gamma, 2 = LN beta (each (1, d), f32).
    LayerNorm math is done in f32 regardless of the weight/activation storage dtype.
    """
    b = ln_ref[0:1, :]
    g = ln_ref[1:2, :]
    beta = ln_ref[2:3, :]
    # Cast activations to the weight storage dtype so bf16 weights hit the bf16 MXU path;
    # accumulation stays f32 via preferred_element_type.
    y = jnp.dot(h.astype(w_ref.dtype), w_ref[...],
                preferred_element_type=jnp.float32) + b
    # Two-pass mean / variance (biased), matching torch LayerNorm and numerically stable.
    mean = jnp.mean(y, axis=-1, keepdims=True)
    d = y - mean
    var = jnp.mean(d * d, axis=-1, keepdims=True)
    y_hat = d * lax.rsqrt(var + LN_EPS)
    return jnp.maximum(y_hat * g + beta, 0.0)


def causal_encoder_kernel(
    x_ref,        # (tb, input_dim)
    w1_ref,       # (input_dim, h0)
    ln1_ref,      # (3, h0)  : bias / gamma / beta
    w2_ref,       # (h0, h1)
    ln2_ref,      # (3, h1)
    wh_ref,       # (h1, head_dim)  fused [causal_mu | causal_logvar | conf_mu | conf_logvar]
    bh_ref,       # (1, head_dim)
    o_ref,        # (tb, head_dim)
):
    h = x_ref[...]
    # shared_encoder: two (Linear -> LayerNorm -> ReLU -> Dropout) blocks
    h = _linear_ln_relu(h, w1_ref, ln1_ref)
    h = _linear_ln_relu(h, w2_ref, ln2_ref)
    # fused heads: single MXU push, single store (no lane padding -> 4x less writeback)
    out = jnp.dot(h.astype(wh_ref.dtype), wh_ref[...],
                  preferred_element_type=jnp.float32) + bh_ref[...]
    o_ref[...] = out.astype(o_ref.dtype)


def pack_params(params, *, use_bf16=False):
    """Fuse the 4 heads into one weight and pack LN params per block.

    use_bf16: store x-facing weight matrices in bf16 (halves weight + activation DMA
    bytes; LN params, head bias and all LayerNorm/accumulator math stay in f32).
    """
    causal_dim = params["wcm"].shape[1]
    conf_dim = params["wfm"].shape[1]
    head_dim = 2 * causal_dim + 2 * conf_dim

    wh = jnp.concatenate(
        [params["wcm"], params["wcl"], params["wfm"], params["wfl"]], axis=1)
    bh = jnp.concatenate(
        [params["bcm"], params["bcl"], params["bfm"], params["bfl"]], axis=1)

    ln1 = jnp.concatenate([params["b1"], params["g1"], params["be1"]], axis=0)  # (3, h0)
    ln2 = jnp.concatenate([params["b2"], params["g2"], params["be2"]], axis=0)  # (3, h1)

    wdt = jnp.bfloat16 if use_bf16 else jnp.float32
    return {
        "w1": params["w1"].astype(wdt), "ln1": ln1.astype(jnp.float32),
        "w2": params["w2"].astype(wdt), "ln2": ln2.astype(jnp.float32),
        "wh": wh.astype(wdt), "bh": bh.astype(jnp.float32),
        "causal_dim": causal_dim, "conf_dim": conf_dim,
        "head_dim": head_dim, "weight_dtype": wdt,
    }


def causal_encoder_forward(x, packed, *, batch_tile=2048):
    """Full CausalEncoder forward in one pallas_call, gridded over batch (no padding copies)."""
    batch, input_dim = x.shape
    h0 = packed["w1"].shape[1]
    h1 = packed["w2"].shape[1]
    head_dim = packed["head_dim"]
    causal_dim = packed["causal_dim"]
    conf_dim = packed["conf_dim"]

    if packed["weight_dtype"] == jnp.bfloat16:
        x = x.astype(jnp.bfloat16)

    # Batch tile: multiple of 8 (sublane constraint), capped by batch_tile.
    tb = min(batch_tile, _round_up(batch, 8))
    # v7x: for big batches, guarantee >= 2 grid steps so ("parallel",) uses both TCs.
    if batch >= 512:
        tb = min(tb, _round_up(pl.cdiv(batch, 2), 8))
    grid = (pl.cdiv(batch, tb),)  # ragged last block handled by Pallas (masked writeback)

    grid_spec = pltpu.PrefetchScalarGridSpec(
        num_scalar_prefetch=0,
        grid=grid,
        in_specs=[
            pl.BlockSpec((tb, input_dim), lambda i: (i, 0)),   # x: tiled over batch
            pl.BlockSpec((input_dim, h0), lambda i: (0, 0)),   # weights stay VMEM-resident
            pl.BlockSpec((3, h0), lambda i: (0, 0)),
            pl.BlockSpec((h0, h1), lambda i: (0, 0)),
            pl.BlockSpec((3, h1), lambda i: (0, 0)),
            pl.BlockSpec((h1, head_dim), lambda i: (0, 0)),
            pl.BlockSpec((1, head_dim), lambda i: (0, 0)),
        ],
        out_specs=pl.BlockSpec((tb, head_dim), lambda i: (i, 0)),
    )

    x_bytes = batch * input_dim * x.dtype.itemsize
    w_bytes = sum(int(packed[k].size) * packed[k].dtype.itemsize
                  for k in ("w1", "ln1", "w2", "ln2", "wh", "bh"))
    out_bytes = batch * head_dim * 4
    cost = pl.CostEstimate(
        flops=2 * batch * (input_dim * h0 + h0 * h1 + h1 * head_dim),
        transcendentals=2 * batch,                     # one rsqrt per LayerNorm row
        bytes_accessed=x_bytes + w_bytes + out_bytes,
    )

    fused = pl.pallas_call(
        causal_encoder_kernel,
        out_shape=jax.ShapeDtypeStruct((batch, head_dim), jnp.float32),
        grid_spec=grid_spec,
        compiler_params=pltpu.CompilerParams(
            dimension_semantics=("parallel",),          # v7x: batch tiles across 2 TCs
            vmem_limit_bytes=32 * 1024 * 1024,          # ~10x headroom even at tb=2048
        ),
        cost_estimate=cost,
    )(x, packed["w1"], packed["ln1"], packed["w2"], packed["ln2"],
      packed["wh"], packed["bh"])

    o0 = causal_dim
    o1 = 2 * causal_dim
    o2 = 2 * causal_dim + conf_dim
    o3 = 2 * causal_dim + 2 * conf_dim
    return {
        "z_causal_mu": fused[:, :o0],
        "z_causal_logvar": fused[:, o0:o1],
        "z_confounding_mu": fused[:, o1:o2],
        "z_confounding_logvar": fused[:, o2:o3],
    }


def init_params(key, input_dim, latent_dim, causal_dim, hidden_dims):
    """Deterministic synthetic parameter init (shapes match the nn.Module)."""
    conf_dim = latent_dim - causal_dim
    keys = jax.random.split(key, 12)
    k = iter(keys)

    def lin(kk, d_in, d_out):
        # store as [in, out] (transposed vs. torch's [out, in])
        w = jax.random.normal(kk, (d_in, d_out), jnp.float32) * (1.0 / jnp.sqrt(d_in))
        b = jax.random.normal(kk, (1, d_out), jnp.float32) * 0.01
        return w, b

    params = {}
    h0, h1 = hidden_dims
    params["w1"], params["b1"] = lin(next(k), input_dim, h0)
    params["g1"] = jnp.ones((1, h0), jnp.float32)
    params["be1"] = jnp.zeros((1, h0), jnp.float32)
    params["w2"], params["b2"] = lin(next(k), h0, h1)
    params["g2"] = jnp.ones((1, h1), jnp.float32)
    params["be2"] = jnp.zeros((1, h1), jnp.float32)
    params["wcm"], params["bcm"] = lin(next(k), h1, causal_dim)
    params["wcl"], params["bcl"] = lin(next(k), h1, causal_dim)
    params["wfm"], params["bfm"] = lin(next(k), h1, conf_dim)
    params["wfl"], params["bfl"] = lin(next(k), h1, conf_dim)
    return params


def reference_forward(x, params):
    """Pure-JAX reference for a correctness check (matches torch eval-mode forward)."""
    def block(h, w, b, g, be):
        y = h @ w + b
        mean = jnp.mean(y, axis=-1, keepdims=True)
        var = jnp.mean((y - mean) ** 2, axis=-1, keepdims=True)
        y = (y - mean) / jnp.sqrt(var + LN_EPS) * g + be
        return jnp.maximum(y, 0.0)

    h = block(x, params["w1"], params["b1"], params["g1"], params["be1"])
    h = block(h, params["w2"], params["b2"], params["g2"], params["be2"])
    return {
        "z_causal_mu": h @ params["wcm"] + params["bcm"],
        "z_causal_logvar": h @ params["wcl"] + params["bcl"],
        "z_confounding_mu": h @ params["wfm"] + params["bfm"],
        "z_confounding_logvar": h @ params["wfl"] + params["bfl"],
    }


if __name__ == "__main__":
    # Small shapes consistent with the module's forward.
    INPUT_DIM = 32
    LATENT_DIM = 16
    CAUSAL_DIM = 8
    HIDDEN_DIMS = [64, 32]
    NAMES = ("z_causal_mu", "z_causal_logvar", "z_confounding_mu", "z_confounding_logvar")

    key = jax.random.PRNGKey(0)
    kx, kp, kx2 = jax.random.split(key, 3)
    params = init_params(kp, INPUT_DIM, LATENT_DIM, CAUSAL_DIM, HIDDEN_DIMS)
    packed = pack_params(params)  # f32 weights (bf16 option available via use_bf16=True)

    # Case 1: batch divisible by the tile.
    x = jax.random.normal(kx, (8, INPUT_DIM), jnp.float32)
    out = jax.block_until_ready(causal_encoder_forward(x, packed))
    ref = reference_forward(x, params)
    for name in NAMES:
        assert out[name].shape == ref[name].shape, name
        assert jnp.allclose(out[name], ref[name], atol=1e-4, rtol=1e-4), name

    # Case 2: ragged batch (exercises the no-pad cdiv grid with masked last block).
    x2 = jax.random.normal(kx2, (13, INPUT_DIM), jnp.float32)
    out2 = jax.block_until_ready(causal_encoder_forward(x2, packed))
    ref2 = reference_forward(x2, params)
    for name in NAMES:
        assert out2[name].shape == ref2[name].shape, name
        assert jnp.allclose(out2[name], ref2[name], atol=1e-4, rtol=1e-4), name

    print("KERNEL_OK")
</pallas_src>

<mosaic_0001>
module attributes {stable_mosaic.version = 11 : i64} {
  func.func @causal_encoder_kernel(%arg0: i32, %arg1: memref<8x32xf32, #tpu.memory_space<vmem>>, %arg2: memref<32x64xf32, #tpu.memory_space<vmem>>, %arg3: memref<3x64xf32, #tpu.memory_space<vmem>>, %arg4: memref<64x32xf32, #tpu.memory_space<vmem>>, %arg5: memref<3x32xf32, #tpu.memory_space<vmem>>, %arg6: memref<32x32xf32, #tpu.memory_space<vmem>>, %arg7: memref<1x32xf32, #tpu.memory_space<vmem>>, %arg8: memref<8x32xf32, #tpu.memory_space<vmem>>) attributes {dimension_semantics = [#tpu.dimension_semantics<parallel>], iteration_bounds = array<i64: 1>, scalar_prefetch = 0 : i64, scratch_operands = 0 : i64, tpu.core_type = #tpu.core_type<tc>, window_params = [{transform_indices = @transform_0, window_bounds = array<i64: 8, 32>}, {pipeline_mode = #tpu.pipeline_mode<synchronous>, transform_indices = @transform_1, window_bounds = array<i64: 32, 64>}, {pipeline_mode = #tpu.pipeline_mode<synchronous>, transform_indices = @transform_2, window_bounds = array<i64: 3, 64>}, {pipeline_mode = #tpu.pipeline_mode<synchronous>, transform_indices = @transform_3, window_bounds = array<i64: 64, 32>}, {pipeline_mode = #tpu.pipeline_mode<synchronous>, transform_indices = @transform_4, window_bounds = array<i64: 3, 32>}, {pipeline_mode = #tpu.pipeline_mode<synchronous>, transform_indices = @transform_5, window_bounds = array<i64: 32, 32>}, {pipeline_mode = #tpu.pipeline_mode<synchronous>, transform_indices = @transform_6, window_bounds = array<i64: 1, 32>}, {transform_indices = @transform_7, window_bounds = array<i64: 8, 32>}]} {
    %c0 = arith.constant 0 : index
    %c0_0 = arith.constant 0 : index
    %0 = vector.load %arg1[%c0, %c0_0] : memref<8x32xf32, #tpu.memory_space<vmem>>, vector<8x32xf32>
    %c0_1 = arith.constant 0 : index
    %c0_2 = arith.constant 0 : index
    %1 = vector.load %arg3[%c0_1, %c0_2] : memref<3x64xf32, #tpu.memory_space<vmem>>, vector<1x64xf32>
    %c1 = arith.constant 1 : index
    %c0_3 = arith.constant 0 : index
    %2 = vector.load %arg3[%c1, %c0_3] : memref<3x64xf32, #tpu.memory_space<vmem>>, vector<1x64xf32>
    %c2 = arith.constant 2 : index
    %c0_4 = arith.constant 0 : index
    %3 = vector.load %arg3[%c2, %c0_4] : memref<3x64xf32, #tpu.memory_space<vmem>>, vector<1x64xf32>
    %c0_5 = arith.constant 0 : index
    %c0_6 = arith.constant 0 : index
    %4 = vector.load %arg2[%c0_5, %c0_6] : memref<32x64xf32, #tpu.memory_space<vmem>>, vector<32x64xf32>
    %cst = arith.constant dense<0.000000e+00> : vector<8x64xf32>
    %5 = tpu.matmul %0, %4, %cst {dimension_numbers = #tpu.dot_dimension_numbers<[1], [0], [0], [1], [0, 0, 1, 1], [], []>} : vector<8x32xf32>, vector<32x64xf32>, vector<8x64xf32> -> vector<8x64xf32>
    %6 = vector.broadcast %1 : vector<1x64xf32> to vector<8x64xf32>
    %7 = arith.addf %5, %6 : vector<8x64xf32>
    %cst_7 = arith.constant dense<0.000000e+00> : vector<8xf32>
    %8 = vector.multi_reduction <add>, %7, %cst_7 [1] : vector<8x64xf32> to vector<8xf32>
    %9 = vector.shape_cast %8 : vector<8xf32> to vector<8x1xf32>
    %cst_8 = arith.constant 6.400000e+01 : f32
    %10 = vector.broadcast %cst_8 : f32 to vector<8x1xf32>
    %11 = arith.divf %9, %10 : vector<8x1xf32>
    %12 = vector.broadcast %11 : vector<8x1xf32> to vector<8x64xf32>
    %13 = arith.subf %7, %12 : vector<8x64xf32>
    %14 = arith.mulf %13, %13 : vector<8x64xf32>
    %cst_9 = arith.constant dense<0.000000e+00> : vector<8xf32>
    %15 = vector.multi_reduction <add>, %14, %cst_9 [1] : vector<8x64xf32> to vector<8xf32>
    %16 = vector.shape_cast %15 : vector<8xf32> to vector<8x1xf32>
    %cst_10 = arith.constant 6.400000e+01 : f32
    %17 = vector.broadcast %cst_10 : f32 to vector<8x1xf32>
    %18 = arith.divf %16, %17 : vector<8x1xf32>
    %cst_11 = arith.constant 9.99999974E-6 : f32
    %19 = vector.broadcast %cst_11 : f32 to vector<8x1xf32>
    %20 = arith.addf %18, %19 : vector<8x1xf32>
    %21 = math.rsqrt %20 : vector<8x1xf32>
    %22 = vector.broadcast %21 : vector<8x1xf32> to vector<8x64xf32>
    %23 = arith.mulf %13, %22 : vector<8x64xf32>
    %24 = vector.broadcast %2 : vector<1x64xf32> to vector<8x64xf32>
    %25 = arith.mulf %23, %24 : vector<8x64xf32>
    %26 = vector.broadcast %3 : vector<1x64xf32> to vector<8x64xf32>
    %27 = arith.addf %25, %26 : vector<8x64xf32>
    %cst_12 = arith.constant 0.000000e+00 : f32
    %28 = vector.broadcast %cst_12 : f32 to vector<8x64xf32>
    %29 = arith.maximumf %27, %28 : vector<8x64xf32>
    %c0_13 = arith.constant 0 : index
    %c0_14 = arith.constant 0 : index
    %30 = vector.load %arg5[%c0_13, %c0_14] : memref<3x32xf32, #tpu.memory_space<vmem>>, vector<1x32xf32>
    %c1_15 = arith.constant 1 : index
    %c0_16 = arith.constant 0 : index
    %31 = vector.load %arg5[%c1_15, %c0_16] : memref<3x32xf32, #tpu.memory_space<vmem>>, vector<1x32xf32>
    %c2_17 = arith.constant 2 : index
    %c0_18 = arith.constant 0 : index
    %32 = vector.load %arg5[%c2_17, %c0_18] : memref<3x32xf32, #tpu.memory_space<vmem>>, vector<1x32xf32>
    %c0_19 = arith.constant 0 : index
    %c0_20 = arith.constant 0 : index
    %33 = vector.load %arg4[%c0_19, %c0_20] : memref<64x32xf32, #tpu.memory_space<vmem>>, vector<64x32xf32>
    %cst_21 = arith.constant dense<0.000000e+00> : vector<8x32xf32>
    %34 = tpu.matmul %29, %33, %cst_21 {dimension_numbers = #tpu.dot_dimension_numbers<[1], [0], [0], [1], [0, 0, 1, 1], [], []>} : vector<8x64xf32>, vector<64x32xf32>, vector<8x32xf32> -> vector<8x32xf32>
    %35 = vector.broadcast %30 : vector<1x32xf32> to vector<8x32xf32>
    %36 = arith.addf %34, %35 : vector<8x32xf32>
    %cst_22 = arith.constant dense<0.000000e+00> : vector<8xf32>
    %37 = vector.multi_reduction <add>, %36, %cst_22 [1] : vector<8x32xf32> to vector<8xf32>
    %38 = vector.shape_cast %37 : vector<8xf32> to vector<8x1xf32>
    %cst_23 = arith.constant 3.200000e+01 : f32
    %39 = vector.broadcast %cst_23 : f32 to vector<8x1xf32>
    %40 = arith.divf %38, %39 : vector<8x1xf32>
    %41 = vector.broadcast %40 : vector<8x1xf32> to vector<8x32xf32>
    %42 = arith.subf %36, %41 : vector<8x32xf32>
    %43 = arith.mulf %42, %42 : vector<8x32xf32>
    %cst_24 = arith.constant dense<0.000000e+00> : vector<8xf32>
    %44 = vector.multi_reduction <add>, %43, %cst_24 [1] : vector<8x32xf32> to vector<8xf32>
    %45 = vector.shape_cast %44 : vector<8xf32> to vector<8x1xf32>
    %cst_25 = arith.constant 3.200000e+01 : f32
    %46 = vector.broadcast %cst_25 : f32 to vector<8x1xf32>
    %47 = arith.divf %45, %46 : vector<8x1xf32>
    %cst_26 = arith.constant 9.99999974E-6 : f32
    %48 = vector.broadcast %cst_26 : f32 to vector<8x1xf32>
    %49 = arith.addf %47, %48 : vector<8x1xf32>
    %50 = math.rsqrt %49 : vector<8x1xf32>
    %51 = vector.broadcast %50 : vector<8x1xf32> to vector<8x32xf32>
    %52 = arith.mulf %42, %51 : vector<8x32xf32>
    %53 = vector.broadcast %31 : vector<1x32xf32> to vector<8x32xf32>
    %54 = arith.mulf %52, %53 : vector<8x32xf32>
    %55 = vector.broadcast %32 : vector<1x32xf32> to vector<8x32xf32>
    %56 = arith.addf %54, %55 : vector<8x32xf32>
    %cst_27 = arith.constant 0.000000e+00 : f32
    %57 = vector.broadcast %cst_27 : f32 to vector<8x32xf32>
    %58 = arith.maximumf %56, %57 : vector<8x32xf32>
    %c0_28 = arith.constant 0 : index
    %c0_29 = arith.constant 0 : index
    %59 = vector.load %arg6[%c0_28, %c0_29] : memref<32x32xf32, #tpu.memory_space<vmem>>, vector<32x32xf32>
    %cst_30 = arith.constant dense<0.000000e+00> : vector<8x32xf32>
    %60 = tpu.matmul %58, %59, %cst_30 {dimension_numbers = #tpu.dot_dimension_numbers<[1], [0], [0], [1], [0, 0, 1, 1], [], []>} : vector<8x32xf32>, vector<32x32xf32>, vector<8x32xf32> -> vector<8x32xf32>
    %c0_31 = arith.constant 0 : index
    %c0_32 = arith.constant 0 : index
    %61 = vector.load %arg7[%c0_31, %c0_32] : memref<1x32xf32, #tpu.memory_space<vmem>>, vector<1x32xf32>
    %62 = vector.broadcast %61 : vector<1x32xf32> to vector<8x32xf32>
    %63 = arith.addf %60, %62 : vector<8x32xf32>
    %c0_33 = arith.constant 0 : index
    %c0_34 = arith.constant 0 : index
    %64 = vector.load %arg8[%c0_33, %c0_34] : memref<8x32xf32, #tpu.memory_space<vmem>>, vector<8x32xf32>
    tpu.vector_store %arg8[%c0_33, %c0_34], %63 {strides = array<i32>} : memref<8x32xf32, #tpu.memory_space<vmem>>, vector<8x32xf32>,
    return
  }
  func.func @transform_0(%arg0: i32) -> (i32, i32) {
    %c0_i32 = arith.constant 0 : i32
    %c0_i32_0 = arith.constant 0 : i32
    return %arg0, %c0_i32 : i32, i32
  }
  func.func @transform_1(%arg0: i32) -> (i32, i32) {
    %c0_i32 = arith.constant 0 : i32
    %c0_i32_0 = arith.constant 0 : i32
    %c0_i32_1 = arith.constant 0 : i32
    return %c0_i32, %c0_i32_0 : i32, i32
  }
  func.func @transform_2(%arg0: i32) -> (i32, i32) {
    %c0_i32 = arith.constant 0 : i32
    %c0_i32_0 = arith.constant 0 : i32
    %c0_i32_1 = arith.constant 0 : i32
    return %c0_i32, %c0_i32_0 : i32, i32
  }
  func.func @transform_3(%arg0: i32) -> (i32, i32) {
    %c0_i32 = arith.constant 0 : i32
    %c0_i32_0 = arith.constant 0 : i32
    %c0_i32_1 = arith.constant 0 : i32
    return %c0_i32, %c0_i32_0 : i32, i32
  }
  func.func @transform_4(%arg0: i32) -> (i32, i32) {
    %c0_i32 = arith.constant 0 : i32
    %c0_i32_0 = arith.constant 0 : i32
    %c0_i32_1 = arith.constant 0 : i32
    return %c0_i32, %c0_i32_0 : i32, i32
  }
  func.func @transform_5(%arg0: i32) -> (i32, i32) {
    %c0_i32 = arith.constant 0 : i32
    %c0_i32_0 = arith.constant 0 : i32
    %c0_i32_1 = arith.constant 0 : i32
    return %c0_i32, %c0_i32_0 : i32, i32
  }
  func.func @transform_6(%arg0: i32) -> (i32, i32) {
    %c0_i32 = arith.constant 0 : i32
    %c0_i32_0 = arith.constant 0 : i32
    %c0_i32_1 = arith.constant 0 : i32
    return %c0_i32, %c0_i32_0 : i32, i32
  }
  func.func @transform_7(%arg0: i32) -> (i32, i32) {
    %c0_i32 = arith.constant 0 : i32
    %c0_i32_0 = arith.constant 0 : i32
    return %arg0, %c0_i32 : i32, i32
  }
}

</mosaic_0001>

<llo_original>
// kernel: tpu_custom_call.1
$region0: #{tpu_custom_call.1}
  #allocation0 [shape = 'u32[]', space=smem, size = 0x4, offset = 0x4, fixed_abs, tag = 'smem constant byte address 0x4 - core index']
  #allocation1 [shape = 'u32[144,128]{1,0:T(1,128)}', space=vmem, size = 0x12000, scoped, tag = 'internal scratch']
  %s0 = inlined_call_operand.vmem [shape: f32[8,32], index: 0, kind: input, shape index: {}]
  %s1 = inlined_call_operand.vmem [shape: f32[32,64], index: 1, kind: input, shape index: {}]
  %s2 = inlined_call_operand.vmem [shape: f32[3,64], index: 2, kind: input, shape index: {}]
  %s3 = inlined_call_operand.vmem [shape: f32[64,32], index: 3, kind: input, shape index: {}]
  %s4 = inlined_call_operand.vmem [shape: f32[3,32], index: 4, kind: input, shape index: {}]
  %s5 = inlined_call_operand.vmem [shape: f32[32,32], index: 5, kind: input, shape index: {}]
  %s6 = inlined_call_operand.vmem [shape: f32[1,32], index: 6, kind: input, shape index: {}]
  %s7 = inlined_call_operand.hbm [shape: f32[8,32], index: 7, kind: output, shape index: {}]
  %s8 = sld [smem:[#allocation0]]
  $region38: #{tpu_custom_call.1} parent=0
    _
  %s10 = ssub.s32 1, %s8
  %s11 = scalar_select 0, %s10, %s8
  $region1: #{tpu_custom_call.1} parent=0
    #allocation2 [shape = 'u8[4096]{0}', space=vmem, size = 0x1000, scoped, tag = 'output window, operand 0, single buffered']
    #allocation3 [shape = 's32[1]{0}', space=sflag, size = 0x4, scoped, tag = 'scoped memory for tpu_custom_call.1']
    %12 = vsyncpa [#allocation3], 0
    // Predicated region
    $region2: #{tpu_custom_call.1} parent=1 // pred_check
      _
    $region3: #{tpu_custom_call.1} parent=1 // pred_check_branch
      %14 = sbr.rel (0) target = $region5
    $region4: #{tpu_custom_call.1} parent=1 // pred_region
      _
    $region5: #{tpu_custom_call.1} parent=1 // pred_fallthru
      _
    // Predicated region
    $region6: #{tpu_custom_call.1} parent=1 // pred_check
      _
    $region7: #{tpu_custom_call.1} parent=1 // pred_check_branch
      %16 = sbr.rel (0) target = $region9
    $region8: #{tpu_custom_call.1} parent=1 // pred_region
      _
    $region9: #{tpu_custom_call.1} parent=1 // pred_fallthru
      _
    // Predicated region
    $region10: #{tpu_custom_call.1} parent=1 // pred_check
      _
    $region11: #{tpu_custom_call.1} parent=1 // pred_check_branch
      %18 = sbr.rel (0) target = $region13
    $region12: #{tpu_custom_call.1} parent=1 // pred_region
      _
    $region13: #{tpu_custom_call.1} parent=1 // pred_fallthru
      _
    // Predicated region
    $region14: #{tpu_custom_call.1} parent=1 // pred_check
      _
    $region15: #{tpu_custom_call.1} parent=1 // pred_check_branch
      %20 = sbr.rel (0) target = $region17
    $region16: #{tpu_custom_call.1} parent=1 // pred_region
      _
    $region17: #{tpu_custom_call.1} parent=1 // pred_fallthru
      _
    // Predicated region
    $region18: #{tpu_custom_call.1} parent=1 // pred_check
      _
    $region19: #{tpu_custom_call.1} parent=1 // pred_check_branch
      %22 = sbr.rel (0) target = $region21
    $region20: #{tpu_custom_call.1} parent=1 // pred_region
      _
    $region21: #{tpu_custom_call.1} parent=1 // pred_fallthru
      _
    // Predicated region
    $region22: #{tpu_custom_call.1} parent=1 // pred_check
      _
    $region23: #{tpu_custom_call.1} parent=1 // pred_check_branch
      %24 = sbr.rel (0) target = $region25
    $region24: #{tpu_custom_call.1} parent=1 // pred_region
      _
    $region25: #{tpu_custom_call.1} parent=1 // pred_fallthru
      _
    // Predicated region
    $region26: #{tpu_custom_call.1} parent=1 // pred_check
      _
    $region27: #{tpu_custom_call.1} parent=1 // pred_check_branch
      %26 = sbr.rel (0) target = $region29
    $region28: #{tpu_custom_call.1} parent=1 // pred_region
      _
    $region29: #{tpu_custom_call.1} parent=1 // pred_fallthru
      _
    %v27 = vld [vmem:[%s0] sm:$0xff]
    %v28 = vld [vmem:[%s2] sm:$0x1]
    %v29 = vld [vmem:[%s2 + $0x1] sm:$0x1]
    %v30 = vld [vmem:[%s2 + $0x2] sm:$0x1]
    %v31 = vld [vmem:[%s1] sm:$0xff]
    %v32 = vld [vmem:[%s1 + $0x8] sm:$0xff]
    %v33 = vld [vmem:[%s1 + $0x10] sm:$0xff]
    %v34 = vld [vmem:[%s1 + $0x18] sm:$0xff]
    %v35 = vlaneseq
    %v36 = vshrl.u32 %v35, 7
    %v37 = vsub.s32 0, %v36
    %v38 = vrot.slane %v28, %v37
    %vm39 = vcmask 261120
    %v41 = vsel %vm39, %v27, 0
    %43 = vmatprep.subr.mxu0 0.0
    %44 = vmatpush1.msra.mxu0 0.0
    %45 = vmatprep.subr.mxu0 0.0
    %46 = vmatpush1.msra.mxu0 0.0
    %47 = vmatprep.subr.mxu0 0.0
    %48 = vmatpush1.msra.mxu0 0.0
    %49 = vmatprep.subr.mxu0 0.0
    %50 = vmatpush1.msra.mxu0 0.0
    %51 = vmatprep.subr.mxu0 0.0
    %52 = vmatpush1.msra.mxu0 0.0
    %53 = vmatprep.subr.mxu0 0.0
    %54 = vmatpush1.msra.mxu0 0.0
    %55 = vmatprep.subr.mxu0 0.0
    %56 = vmatpush1.msra.mxu0 0.0
    %57 = vmatprep.subr.mxu0 0.0
    %58 = vmatpush1.msra.mxu0 0.0
    %59 = vmatprep.subr.mxu0 0.0
    %60 = vmatpush1.msra.mxu0 0.0
    %61 = vmatprep.subr.mxu0 0.0
    %62 = vmatpush1.msra.mxu0 0.0
    %63 = vmatprep.subr.mxu0 0.0
    %64 = vmatpush1.msra.mxu0 0.0
    %65 = vmatprep.subr.mxu0 0.0
    %66 = vmatpush1.msra.mxu0 0.0
    %67 = vmatprep.subr.mxu0 0.0
    %68 = vmatpush1.msra.mxu0 %v34
    %69 = vmatprep.subr.mxu0 0.0
    %70 = vmatpush1.msra.mxu0 %v33
    %71 = vmatprep.subr.mxu0 0.0
    %72 = vmatpush1.msra.mxu0 %v32
    %73 = vmatprep.subr.mxu0 0.0
    %74 = vmatpush1.msra.mxu0 %v31
    %75 = vmatprep.subr.mxu0 0.0
    %76 = vmatpush2.msra.mxu0 0.0
    %77 = vmatprep.subr.mxu0 0.0
    %78 = vmatpush2.msra.mxu0 0.0
    %79 = vmatprep.subr.mxu0 0.0
    %80 = vmatpush2.msra.mxu0 0.0
    %81 = vmatprep.subr.mxu0 0.0
    %82 = vmatpush2.msra.mxu0 0.0
    %83 = vmatprep.subr.mxu0 0.0
    %84 = vmatpush2.msra.mxu0 0.0
    %85 = vmatprep.subr.mxu0 0.0
    %86 = vmatpush2.msra.mxu0 0.0
    %87 = vmatprep.subr.mxu0 0.0
    %88 = vmatpush2.msra.mxu0 0.0
    %89 = vmatprep.subr.mxu0 0.0
    %90 = vmatpush2.msra.mxu0 0.0
    %91 = vmatprep.subr.mxu0 0.0
    %92 = vmatpush2.msra.mxu0 0.0
    %93 = vmatprep.subr.mxu0 0.0
    %94 = vmatpush2.msra.mxu0 0.0
    %95 = vmatprep.subr.mxu0 0.0
    %96 = vmatpush2.msra.mxu0 0.0
    %97 = vmatprep.subr.mxu0 0.0
    %98 = vmatpush2.msra.mxu0 0.0
    %99 = vmatprep.subr.mxu0 0.0
    %100 = vmatpush2.msra.mxu0 0.0
    %101 = vmatprep.subr.mxu0 0.0
    %102 = vmatpush2.msra.mxu0 0.0
    %103 = vmatprep.subr.mxu0 0.0
    %104 = vmatpush2.msra.mxu0 0.0
    %105 = vmatprep.subr.mxu0 0.0
    %106 = vmatpush2.msra.mxu0 0.0
    %107 = vmatprep.mubr.f32.mxu0 0.0
    %108 = vmatmul.mubr.f32.gmra.mxu0 %v41
    %v109 = vpop.f32.mrf.mxu0
    %v110 = vadd.f32 %v38, %v109
    %v111 = vpop.f32.mrf.mxu0
    %112 = vdwg.mxu0
    %vm113 = vcmask 523264
    %v114 = vsel %vm113, %v110, 0.0
    %115 = vadd.xlane.f32.xlu0 %v114
    %v116 = vpop.xlane.xlu0 %115
    %v117 = vrcp.pop 64.0
    %v118 = vmul.f32 %v116, %v117
    %v119 = vsub.f32 %v110, %v118
    %v120 = vmul.f32 %v119, %v119
    %v121 = vsel %vm113, %v120, 0.0
    %122 = vadd.xlane.f32.xlu0 %v121
    %v123 = vpop.xlane.xlu0 %122
    %v124 = vmul.f32 %v123, %v117
    %v125 = vadd.f32 %v124, 1e-05
    %v126 = vrsqrt.pop %v125
    %v127 = vmul.f32 %v119, %v126
    %v128 = vlaneseq
    %v129 = vshrl.u32 %v128, 7
    %v130 = vsub.s32 0, %v129
    %v131 = vrot.slane %v29, %v130
    %v132 = vmul.f32 %v127, %v131
    %v133 = vlaneseq
    %v134 = vshrl.u32 %v133, 7
    %v135 = vsub.s32 0, %v134
    %v136 = vrot.slane %v30, %v135
    %v137 = vadd.f32 %v132, %v136
    %v138 = vmax.f32 %v137, 0.0
    %v139 = vld [vmem:[%s4] sm:$0x1]
    %v140 = vld [vmem:[%s4 + $0x1] sm:$0x1]
    %v141 = vld [vmem:[%s4 + $0x2] sm:$0x1]
    %v142 = vld [vmem:[%s3] sm:$0xff]
    %v143 = vld [vmem:[%s3 + $0x8] sm:$0xff]
    %v144 = vld [vmem:[%s3 + $0x10] sm:$0xff]
    %v145 = vld [vmem:[%s3 + $0x18] sm:$0xff]
    %v146 = vld [vmem:[%s3 + $0x20] sm:$0xff]
    %v147 = vld [vmem:[%s3 + $0x28] sm:$0xff]
    %v148 = vld [vmem:[%s3 + $0x30] sm:$0xff]
    %v149 = vld [vmem:[%s3 + $0x38] sm:$0xff]
    %v150 = vlaneseq
    %v151 = vshrl.u32 %v150, 7
    %v152 = vsub.s32 0, %v151
    %v153 = vrot.slane %v139, %v152
    %v155 = vsel %vm113, %v138, 0
    %157 = vmatprep.subr.mxu0 0.0
    %158 = vmatpush1.msra.mxu0 0.0
    %159 = vmatprep.subr.mxu0 0.0
    %160 = vmatpush1.msra.mxu0 0.0
    %161 = vmatprep.subr.mxu0 0.0
    %162 = vmatpush1.msra.mxu0 0.0
    %163 = vmatprep.subr.mxu0 0.0
    %164 = vmatpush1.msra.mxu0 0.0
    %165 = vmatprep.subr.mxu0 0.0
    %166 = vmatpush1.msra.mxu0 0.0
    %167 = vmatprep.subr.mxu0 0.0
    %168 = vmatpush1.msra.mxu0 0.0
    %169 = vmatprep.subr.mxu0 0.0
    %170 = vmatpush1.msra.mxu0 0.0
    %171 = vmatprep.subr.mxu0 0.0
    %172 = vmatpush1.msra.mxu0 0.0
    %173 = vmatprep.subr.mxu0 0.0
    %174 = vmatpush1.msra.mxu0 %v149
    %175 = vmatprep.subr.mxu0 0.0
    %176 = vmatpush1.msra.mxu0 %v148
    %177 = vmatprep.subr.mxu0 0.0
    %178 = vmatpush1.msra.mxu0 %v147
    %179 = vmatprep.subr.mxu0 0.0
    %180 = vmatpush1.msra.mxu0 %v146
    %181 = vmatprep.subr.mxu0 0.0
    %182 = vmatpush1.msra.mxu0 %v145
    %183 = vmatprep.subr.mxu0 0.0
    %184 = vmatpush1.msra.mxu0 %v144
    %185 = vmatprep.subr.mxu0 0.0
    %186 = vmatpush1.msra.mxu0 %v143
    %187 = vmatprep.subr.mxu0 0.0
    %188 = vmatpush1.msra.mxu0 %v142
    %189 = vmatprep.subr.mxu0 0.0
    %190 = vmatpush2.msra.mxu0 0.0
    %191 = vmatprep.subr.mxu0 0.0
    %192 = vmatpush2.msra.mxu0 0.0
    %193 = vmatprep.subr.mxu0 0.0
    %194 = vmatpush2.msra.mxu0 0.0
    %195 = vmatprep.subr.mxu0 0.0
    %196 = vmatpush2.msra.mxu0 0.0
    %197 = vmatprep.subr.mxu0 0.0
    %198 = vmatpush2.msra.mxu0 0.0
    %199 = vmatprep.subr.mxu0 0.0
    %200 = vmatpush2.msra.mxu0 0.0
    %201 = vmatprep.subr.mxu0 0.0
    %202 = vmatpush2.msra.mxu0 0.0
    %203 = vmatprep.subr.mxu0 0.0
    %204 = vmatpush2.msra.mxu0 0.0
    %205 = vmatprep.subr.mxu0 0.0
    %206 = vmatpush2.msra.mxu0 0.0
    %207 = vmatprep.subr.mxu0 0.0
    %208 = vmatpush2.msra.mxu0 0.0
    %209 = vmatprep.subr.mxu0 0.0
    %210 = vmatpush2.msra.mxu0 0.0
    %211 = vmatprep.subr.mxu0 0.0
    %212 = vmatpush2.msra.mxu0 0.0
    %213 = vmatprep.subr.mxu0 0.0
    %214 = vmatpush2.msra.mxu0 0.0
    %215 = vmatprep.subr.mxu0 0.0
    %216 = vmatpush2.msra.mxu0 0.0
    %217 = vmatprep.subr.mxu0 0.0
    %218 = vmatpush2.msra.mxu0 0.0
    %219 = vmatprep.subr.mxu0 0.0
    %220 = vmatpush2.msra.mxu0 0.0
    %221 = vmatprep.mubr.f32.mxu0 0.0
    %222 = vmatmul.mubr.f32.gmra.mxu0 %v155
    %v223 = vpop.f32.mrf.mxu0
    %v224 = vadd.f32 %v153, %v223
    %v225 = vpop.f32.mrf.mxu0
    %226 = vdwg.mxu0
    %v227 = vsel %vm39, %v224, 0.0
    %228 = vadd.xlane.f32.xlu0 %v227
    %v229 = vpop.xlane.xlu0 %228
    %v230 = vrcp.pop 32.0
    %v231 = vmul.f32 %v229, %v230
    %v232 = vsub.f32 %v224, %v231
    %v233 = vmul.f32 %v232, %v232
    %v234 = vsel %vm39, %v233, 0.0
    %235 = vadd.xlane.f32.xlu0 %v234
    %v236 = vpop.xlane.xlu0 %235
    %v237 = vmul.f32 %v236, %v230
    %v238 = vadd.f32 %v237, 1e-05
    %v239 = vrsqrt.pop %v238
    %v240 = vmul.f32 %v232, %v239
    %v241 = vlaneseq
    %v242 = vshrl.u32 %v241, 7
    %v243 = vsub.s32 0, %v242
    %v244 = vrot.slane %v140, %v243
    %v245 = vmul.f32 %v240, %v244
    %v246 = vlaneseq
    %v247 = vshrl.u32 %v246, 7
    %v248 = vsub.s32 0, %v247
    %v249 = vrot.slane %v141, %v248
    %v250 = vadd.f32 %v245, %v249
    %v251 = vmax.f32 %v250, 0.0
    %v252 = vld [vmem:[%s5] sm:$0xff]
    %v253 = vld [vmem:[%s5 + $0x8] sm:$0xff]
    %v254 = vld [vmem:[%s5 + $0x10] sm:$0xff]
    %v255 = vld [vmem:[%s5 + $0x18] sm:$0xff]
    %v256 = vld [vmem:[%s6] sm:$0x1]
    %v258 = vlaneseq
    %v259 = vshrl.u32 %v258, 7
    %v260 = vsub.s32 0, %v259
    %v261 = vrot.slane %v256, %v260
    %v264 = vsel %vm39, %v251, 0
    %266 = vmatprep.subr.mxu0 0.0
    %267 = vmatpush1.msra.mxu0 0.0
    %268 = vmatprep.subr.mxu0 0.0
    %269 = vmatpush1.msra.mxu0 0.0
    %270 = vmatprep.subr.mxu0 0.0
    %271 = vmatpush1.msra.mxu0 0.0
    %272 = vmatprep.subr.mxu0 0.0
    %273 = vmatpush1.msra.mxu0 0.0
    %274 = vmatprep.subr.mxu0 0.0
    %275 = vmatpush1.msra.mxu0 0.0
    %276 = vmatprep.subr.mxu0 0.0
    %277 = vmatpush1.msra.mxu0 0.0
    %278 = vmatprep.subr.mxu0 0.0
    %279 = vmatpush1.msra.mxu0 0.0
    %280 = vmatprep.subr.mxu0 0.0
    %281 = vmatpush1.msra.mxu0 0.0
    %282 = vmatprep.subr.mxu0 0.0
    %283 = vmatpush1.msra.mxu0 0.0
    %284 = vmatprep.subr.mxu0 0.0
    %285 = vmatpush1.msra.mxu0 0.0
    %286 = vmatprep.subr.mxu0 0.0
    %287 = vmatpush1.msra.mxu0 0.0
    %288 = vmatprep.subr.mxu0 0.0
    %289 = vmatpush1.msra.mxu0 0.0
    %290 = vmatprep.subr.mxu0 0.0
    %291 = vmatpush1.msra.mxu0 %v255
    %292 = vmatprep.subr.mxu0 0.0
    %293 = vmatpush1.msra.mxu0 %v254
    %294 = vmatprep.subr.mxu0 0.0
    %295 = vmatpush1.msra.mxu0 %v253
    %296 = vmatprep.subr.mxu0 0.0
    %297 = vmatpush1.msra.mxu0 %v252
    %298 = vmatprep.subr.mxu0 0.0
    %299 = vmatpush2.msra.mxu0 0.0
    %300 = vmatprep.subr.mxu0 0.0
    %301 = vmatpush2.msra.mxu0 0.0
    %302 = vmatprep.subr.mxu0 0.0
    %303 = vmatpush2.msra.mxu0 0.0
    %304 = vmatprep.subr.mxu0 0.0
    %305 = vmatpush2.msra.mxu0 0.0
    %306 = vmatprep.subr.mxu0 0.0
    %307 = vmatpush2.msra.mxu0 0.0
    %308 = vmatprep.subr.mxu0 0.0
    %309 = vmatpush2.msra.mxu0 0.0
    %310 = vmatprep.subr.mxu0 0.0
    %311 = vmatpush2.msra.mxu0 0.0
    %312 = vmatprep.subr.mxu0 0.0
    %313 = vmatpush2.msra.mxu0 0.0
    %314 = vmatprep.subr.mxu0 0.0
    %315 = vmatpush2.msra.mxu0 0.0
    %316 = vmatprep.subr.mxu0 0.0
    %317 = vmatpush2.msra.mxu0 0.0
    %318 = vmatprep.subr.mxu0 0.0
    %319 = vmatpush2.msra.mxu0 0.0
    %320 = vmatprep.subr.mxu0 0.0
    %321 = vmatpush2.msra.mxu0 0.0
    %322 = vmatprep.subr.mxu0 0.0
    %323 = vmatpush2.msra.mxu0 0.0
    %324 = vmatprep.subr.mxu0 0.0
    %325 = vmatpush2.msra.mxu0 0.0
    %326 = vmatprep.subr.mxu0 0.0
    %327 = vmatpush2.msra.mxu0 0.0
    %328 = vmatprep.subr.mxu0 0.0
    %329 = vmatpush2.msra.mxu0 0.0
    %330 = vmatprep.mubr.f32.mxu0 0.0
    %331 = vmatmul.mubr.f32.gmra.mxu0 %v264
    %v332 = vpop.f32.mrf.mxu0
    %v333 = vadd.f32 %v261, %v332
    %v334 = vpop.f32.mrf.mxu0
    %335 = vdwg.mxu0
    %336 = vst.msk [vmem:[#allocation2] sm:$0xff] %vm39, %v333
    // Predicated region
    $region30: #{tpu_custom_call.1} parent=1 // pred_check
      _
    $region31: #{tpu_custom_call.1} parent=1 // pred_check_branch
      %338 = sbr.rel (0) target = $region33
    $region32: #{tpu_custom_call.1} parent=1 // pred_region
      %s340 = ssub.s32 128, 128
      %341 = vsyncadd [#allocation3], %s340
      %s343 = sshll.u32 [#allocation2], 4
      %s344 = int_to_ptr.vmem [resolvable:$true] %s343
      %346 = dma.vmem_to_hbm [thread:$0]  %s344, 128, %s7, [#allocation3]
    $region33: #{tpu_custom_call.1} parent=1 // pred_fallthru
      _
    // Predicated region
    $region34: #{tpu_custom_call.1} parent=1 // pred_check
      _
    $region35: #{tpu_custom_call.1} parent=1 // pred_check_branch
      %348 = sbr.rel (0) target = $region37
    $region36: #{tpu_custom_call.1} parent=1 // pred_region
      %349 = dma.done [#allocation3], 128
    $region37: #{tpu_custom_call.1} parent=1 // pred_fallthru
      _
    %350 = vsyncpa [#allocation3], 1

</llo_original>
